<compile_context>
chip_gen: v7x
topology: tpu7x:2x2x1
jax: 0.10.0
libtpu: 0.0.40
codegen_flags: <defaults>
</compile_context>

<pallas_src>
import jax
import jax.numpy as jnp
from jax.experimental import pallas as pl
from jax.experimental.pallas import tpu as pltpu


# ----------------------------------------------------------------------------- kernel
def msc_kernel(x_ref, w0_ref, w1_ref, w2_ref, b_ref, o_ref):
    # x_ref/o_ref: (16, pt, C)   w*_ref: (C, C) in matmul dtype   b_ref: (1, C) f32
    pt = x_ref.shape[1]
    c = x_ref.shape[2]
    md = w0_ref.dtype                        # matmul dtype (bf16 on TPU, f32 fallback)

    x = x_ref[...]                           # (16, pt, C) in activation dtype
    xq = x.reshape(4, 4, pt, c)              # (quadrant, within-quadrant, pt, C)

    # ---- 2x2 quadrant maxes (tree), reused for the 4x4 max: 15 maxes total ----------
    m2 = jnp.maximum(jnp.maximum(xq[:, 0], xq[:, 1]),
                     jnp.maximum(xq[:, 2], xq[:, 3]))          # (4, pt, C)
    m4 = jnp.maximum(jnp.maximum(m2[0], m2[1]),
                     jnp.maximum(m2[2], m2[3]))                # (pt, C)

    # ---- three large-M MXU matmuls, f32 accumulation ---------------------------------
    # pt is sublane-aligned so these leading-dim merges are layout-preserving.
    t0 = jnp.dot(x.reshape(16 * pt, c).astype(md), w0_ref[...],
                 preferred_element_type=jnp.float32)           # (16*pt, C)
    t1 = jnp.dot(m2.reshape(4 * pt, c).astype(md), w1_ref[...],
                 preferred_element_type=jnp.float32)           # (4*pt, C)
    t2 = jnp.dot(m4.astype(md), w2_ref[...],
                 preferred_element_type=jnp.float32)           # (pt, C)

    # ---- hoisted epilogue: (t2+b) once, (+t1_q) per quadrant, (+t0_k) per offset -----
    base2 = t2 + b_ref[...]                                    # (pt, C)
    base = t1.reshape(4, pt, c) + base2                        # (4, pt, C)
    out = t0.reshape(4, 4, pt, c) + base[:, None]              # (4, 4, pt, C)

    # Single dense store (lane-dense whenever C % 128 == 0).
    o_ref[...] = jnp.maximum(out, 0.0).reshape(16, pt, c).astype(o_ref.dtype)


# ------------------------------------------------------------------------- tiling util
def _round_up(a, b):
    return -(-a // b) * b


def _sublane_align(dtype):
    # f32 -> 8, bf16/f16 -> 16, int8/fp8 -> 32 (packed sublane tile).
    return 8 * max(1, 4 // jnp.dtype(dtype).itemsize)


def _vmem_limit_bytes():
    cap = 64 * 1024 * 1024                       # conservative default (v7x per-TC VMEM)
    try:
        info = pltpu.get_tpu_info()
        cap = int(getattr(info, "vmem_capacity_bytes", cap))
    except Exception:
        pass
    cap = max(16 * 1024 * 1024, min(cap, 128 * 1024 * 1024))
    # v7x (64 MiB) -> 48 MiB scoped limit; v5e/v6e (128 MiB) -> 96 MiB.
    return min(cap * 3 // 4, 96 * 1024 * 1024)


def _choose_tiling(N, P, C, act_dtype, out_dtype, w_dtype, vmem_limit):
    """Pick (pt, n_tiles) so the double-buffered in/out blocks plus the resident
    (double-buffered) weights fit comfortably inside vmem_limit."""
    align = max(_sublane_align(act_dtype), _sublane_align(out_dtype))
    ab = jnp.dtype(act_dtype).itemsize
    ob = jnp.dtype(out_dtype).itemsize
    wb = jnp.dtype(w_dtype).itemsize
    resident = 2 * (3 * C * C * wb + C * 4)            # weights + bias, double-buffered
    budget = max((vmem_limit - resident) // 2, 1 << 20)  # ~half the limit for blocks
    per_row = 16 * C * (ab + ob) * 2                     # in + out rows, double-buffered
    max_pt = max(align, (budget // per_row) // align * align)
    n_tiles = -(-P // max_pt)                            # cdiv
    if N <= 1 and n_tiles == 1 and P > align:
        n_tiles = 2          # v7x: split the P axis so both TensorCores are used at N=1
    pt = _round_up(-(-P // n_tiles), align)
    return pt, n_tiles


# -------------------------------------------------------------- block-layout entry point
def msc_block_layout(xt, w0, w1, w2, bias, *, pt, out_dtype, vmem_limit):
    """xt: (N, 16, P_pad, C) block-offset layout, P_pad % pt == 0.
    Callers that keep this layout across adjacent ops should use this directly and skip
    the NCHW relayout round-trips in msc_pallas (they dominate end-to-end HBM traffic)."""
    N, _, P_pad, C = xt.shape
    n_tiles = P_pad // pt
    b2d = bias.reshape(1, C).astype(jnp.float32)

    return pl.pallas_call(
        msc_kernel,
        out_shape=jax.ShapeDtypeStruct((N, 16, P_pad, C), out_dtype),
        grid_spec=pltpu.PrefetchScalarGridSpec(
            num_scalar_prefetch=0,
            # P tiles first: this axis is the one sharded across the two v7x TensorCores.
            grid=(n_tiles, N),
            in_specs=[
                pl.BlockSpec((None, 16, pt, C), lambda p, n: (n, 0, p, 0)),
                # Constant index_maps -> weights/bias stay resident, no per-step re-DMA.
                pl.BlockSpec((C, C), lambda p, n: (0, 0)),
                pl.BlockSpec((C, C), lambda p, n: (0, 0)),
                pl.BlockSpec((C, C), lambda p, n: (0, 0)),
                pl.BlockSpec((1, C), lambda p, n: (0, 0)),
            ],
            out_specs=pl.BlockSpec((None, 16, pt, C), lambda p, n: (n, 0, p, 0)),
        ),
        compiler_params=pltpu.CompilerParams(
            dimension_semantics=("parallel", "parallel"),
            vmem_limit_bytes=int(vmem_limit),
        ),
    )(xt, w0, w1, w2, b2d)


# ------------------------------------------------------------------------ NCHW wrapper
def msc_pallas(x, w_full, bias, *, act_dtype=jnp.bfloat16, matmul_dtype=None,
               out_dtype=None, pt=None):
    """x: (N, C, H, W).  w_full: (3C, C) with w_full[i, o] = torch_w[o, i, 0, 0].
    bias: (C,).  act_dtype: dtype the activations are DMA'd/pooled in (bf16 halves HBM
    traffic).  matmul_dtype: MXU input dtype; None -> bf16 on TPU, f32 elsewhere (the
    CPU executor does not support BF16xBF16=F32 dots).  out_dtype: kernel output dtype
    (pass bf16 if the consumer accepts it to halve writeback); None -> x.dtype."""
    N, C, H, W = x.shape
    # TODO(synk): general nearest-resize for H or W not divisible by 4 is not implemented.
    assert H % 4 == 0 and W % 4 == 0, "MSC Pallas kernel needs H, W divisible by 4"
    Hb, Wb = H // 4, W // 4
    P = Hb * Wb

    if matmul_dtype is None:
        matmul_dtype = jnp.bfloat16 if jax.default_backend() == "tpu" else jnp.float32
    if out_dtype is None:
        out_dtype = x.dtype

    vmem_limit = _vmem_limit_bytes()
    align = max(_sublane_align(act_dtype), _sublane_align(out_dtype))
    if pt is None:
        pt, n_tiles = _choose_tiling(N, P, C, act_dtype, out_dtype, matmul_dtype,
                                     vmem_limit)
    else:
        assert pt % align == 0, f"pt must be a multiple of {align} for these dtypes"
        n_tiles = -(-P // pt)
    P_pad = pt * n_tiles

    # NCHW -> (N, 16, P, C) quadrant-major block-offset layout.  The dtype cast is
    # folded in first so the transpose copy moves half the bytes when act_dtype=bf16.
    # TODO(synk): for C < 128 the lane dim is mostly masked; a spatial-in-lanes layout
    # with a VPU broadcast-FMA conv would be the right fix for genuinely tiny C.
    xt = x.astype(act_dtype)
    xt = xt.reshape(N, C, Hb, 2, 2, Wb, 2, 2)            # (n, c, hb, h1, h0, wb, w1, w0)
    xt = jnp.transpose(xt, (0, 3, 6, 4, 7, 2, 5, 1))     # (n, h1, w1, h0, w0, hb, wb, c)
    xt = xt.reshape(N, 16, P, C)                         # k = (h1*2+w1)*4 + (h0*2+w0)
    if P_pad != P:
        # Pad the (already copying) relayout instead of silently inflating the tile.
        xt = jnp.pad(xt, ((0, 0), (0, 0), (0, P_pad - P), (0, 0)))

    w0 = w_full[:C].astype(matmul_dtype)                 # acts on x
    w1 = w_full[C:2 * C].astype(matmul_dtype)            # acts on up(maxpool2x2(x))
    w2 = w_full[2 * C:].astype(matmul_dtype)             # acts on up(maxpool4x4(x))

    out = msc_block_layout(xt, w0, w1, w2, bias, pt=pt, out_dtype=out_dtype,
                           vmem_limit=vmem_limit)

    # (N, 16, P_pad, C) -> NCHW (inverse of the input relayout, padding dropped).
    out = out[:, :, :P, :]
    out = out.reshape(N, 2, 2, 2, 2, Hb, Wb, C)          # (n, h1, w1, h0, w0, hb, wb, c)
    out = jnp.transpose(out, (0, 7, 5, 1, 3, 6, 2, 4))   # (n, c, hb, h1, h0, wb, w1, w0)
    return out.reshape(N, C, H, W)


# --------------------------------------------------------------------------- reference
def msc_reference(x, w_full, bias, act_dtype=jnp.float32, matmul_dtype=jnp.float32):
    """Pure-JAX reference matching the PyTorch module (NCHW), with the same activation /
    matmul dtype choices as the kernel so comparisons are apples-to-apples."""
    N, C, H, W = x.shape
    xa = x.astype(act_dtype)
    p1 = xa.reshape(N, C, H // 2, 2, W // 2, 2).max(axis=(3, 5))
    p2 = xa.reshape(N, C, H // 4, 4, W // 4, 4).max(axis=(3, 5))
    x1 = jnp.repeat(jnp.repeat(p1, 2, axis=2), 2, axis=3)      # nearest upsample
    x2 = jnp.repeat(jnp.repeat(p2, 4, axis=2), 4, axis=3)
    cat = jnp.concatenate([xa, x1, x2], axis=1).astype(matmul_dtype)   # (N, 3C, H, W)
    w = w_full.astype(matmul_dtype)
    out = jnp.einsum('nihw,io->nohw', cat, w,
                     preferred_element_type=jnp.float32) + bias[None, :, None, None]
    return jnp.maximum(out, 0.0)


if __name__ == "__main__":
    key = jax.random.PRNGKey(0)
    k_x, k_w, k_b, k_x2 = jax.random.split(key, 4)

    N, C, H, W = 2, 4, 16, 16
    x = jax.random.normal(k_x, (N, C, H, W), dtype=jnp.float32)

    # Synthetic Conv2d(3C -> C, kernel_size=1) parameters: w_full[i, o] == torch_w[o, i, 0, 0]
    w_full = 0.1 * jax.random.normal(k_w, (3 * C, C), dtype=jnp.float32)
    bias = 0.1 * jax.random.normal(k_b, (C,), dtype=jnp.float32)

    # 1) Exact-f32 path (activations, matmuls and output all f32).
    out_f32 = jax.block_until_ready(
        msc_pallas(x, w_full, bias, act_dtype=jnp.float32, matmul_dtype=jnp.float32))
    ref_f32 = msc_reference(x, w_full, bias,
                            act_dtype=jnp.float32, matmul_dtype=jnp.float32)
    assert out_f32.shape == (N, C, H, W)
    assert jnp.allclose(out_f32, ref_f32, atol=1e-4, rtol=1e-4), "f32 mismatch vs reference"

    # 2) Default bandwidth-saving path: bf16 activations; matmul dtype auto-selected
    #    (bf16 on a TPU backend, f32 otherwise so the CPU dot executor accepts it).
    md = jnp.bfloat16 if jax.default_backend() == "tpu" else jnp.float32
    out_def = jax.block_until_ready(msc_pallas(x, w_full, bias))
    ref_def = msc_reference(x, w_full, bias, act_dtype=jnp.bfloat16, matmul_dtype=md)
    assert out_def.shape == (N, C, H, W)
    assert jnp.allclose(out_def, ref_def, atol=2e-2, rtol=2e-2), "default-path mismatch"

    # 3) N=1 with H=W=24: P=36 has no aligned divisor -> exercises P padding and the
    #    forced 2-tile split of the P axis (v7x dual-TensorCore path).
    x3 = jax.random.normal(k_x2, (1, C, 24, 24), dtype=jnp.float32)
    out3 = jax.block_until_ready(msc_pallas(x3, w_full, bias))
    ref3 = msc_reference(x3, w_full, bias, act_dtype=jnp.bfloat16, matmul_dtype=md)
    assert out3.shape == (1, C, 24, 24)
    assert jnp.allclose(out3, ref3, atol=2e-2, rtol=2e-2), "padded-grid mismatch"

    print("KERNEL_OK")
</pallas_src>

<mosaic_0001>
module attributes {stable_mosaic.version = 11 : i64} {
  func.func @msc_kernel(%arg0: i32, %arg1: i32, %arg2: memref<1x16x16x4xf32, #tpu.memory_space<vmem>>, %arg3: memref<4x4xf32, #tpu.memory_space<vmem>>, %arg4: memref<4x4xf32, #tpu.memory_space<vmem>>, %arg5: memref<4x4xf32, #tpu.memory_space<vmem>>, %arg6: memref<1x4xf32, #tpu.memory_space<vmem>>, %arg7: memref<1x16x16x4xf32, #tpu.memory_space<vmem>>) attributes {dimension_semantics = [#tpu.dimension_semantics<parallel>, #tpu.dimension_semantics<parallel>], iteration_bounds = array<i64: 1, 2>, scalar_prefetch = 0 : i64, scratch_operands = 0 : i64, tpu.core_type = #tpu.core_type<tc>, window_params = [{transform_indices = @transform_0, window_bounds = array<i64: 1, 16, 16, 4>}, {pipeline_mode = #tpu.pipeline_mode<synchronous>, transform_indices = @transform_1, window_bounds = array<i64: 4, 4>}, {pipeline_mode = #tpu.pipeline_mode<synchronous>, transform_indices = @transform_2, window_bounds = array<i64: 4, 4>}, {pipeline_mode = #tpu.pipeline_mode<synchronous>, transform_indices = @transform_3, window_bounds = array<i64: 4, 4>}, {pipeline_mode = #tpu.pipeline_mode<synchronous>, transform_indices = @transform_4, window_bounds = array<i64: 1, 4>}, {transform_indices = @transform_5, window_bounds = array<i64: 1, 16, 16, 4>}]} {
    %c0 = arith.constant 0 : index
    %c0_0 = arith.constant 0 : index
    %c0_1 = arith.constant 0 : index
    %c0_2 = arith.constant 0 : index
    %0 = vector.load %arg2[%c0, %c0_0, %c0_1, %c0_2] : memref<1x16x16x4xf32, #tpu.memory_space<vmem>>, vector<1x16x16x4xf32>
    %1 = vector.shape_cast %0 : vector<1x16x16x4xf32> to vector<16x16x4xf32>
    %2 = vector.shape_cast %1 : vector<16x16x4xf32> to vector<4x4x16x4xf32>
    %3 = vector.extract_strided_slice %2 {offsets = [0, 0, 0, 0], sizes = [4, 1, 16, 4], strides = [1, 1, 1, 1]} : vector<4x4x16x4xf32> to vector<4x1x16x4xf32>
    %4 = vector.shape_cast %3 : vector<4x1x16x4xf32> to vector<4x16x4xf32>
    %5 = vector.extract_strided_slice %2 {offsets = [0, 1, 0, 0], sizes = [4, 1, 16, 4], strides = [1, 1, 1, 1]} : vector<4x4x16x4xf32> to vector<4x1x16x4xf32>
    %6 = vector.shape_cast %5 : vector<4x1x16x4xf32> to vector<4x16x4xf32>
    %7 = arith.maximumf %4, %6 : vector<4x16x4xf32>
    %8 = vector.extract_strided_slice %2 {offsets = [0, 2, 0, 0], sizes = [4, 1, 16, 4], strides = [1, 1, 1, 1]} : vector<4x4x16x4xf32> to vector<4x1x16x4xf32>
    %9 = vector.shape_cast %8 : vector<4x1x16x4xf32> to vector<4x16x4xf32>
    %10 = vector.extract_strided_slice %2 {offsets = [0, 3, 0, 0], sizes = [4, 1, 16, 4], strides = [1, 1, 1, 1]} : vector<4x4x16x4xf32> to vector<4x1x16x4xf32>
    %11 = vector.shape_cast %10 : vector<4x1x16x4xf32> to vector<4x16x4xf32>
    %12 = arith.maximumf %9, %11 : vector<4x16x4xf32>
    %13 = arith.maximumf %7, %12 : vector<4x16x4xf32>
    %14 = vector.extract_strided_slice %13 {offsets = [0, 0, 0], sizes = [1, 16, 4], strides = [1, 1, 1]} : vector<4x16x4xf32> to vector<1x16x4xf32>
    %15 = vector.shape_cast %14 : vector<1x16x4xf32> to vector<16x4xf32>
    %16 = vector.extract_strided_slice %13 {offsets = [1, 0, 0], sizes = [1, 16, 4], strides = [1, 1, 1]} : vector<4x16x4xf32> to vector<1x16x4xf32>
    %17 = vector.shape_cast %16 : vector<1x16x4xf32> to vector<16x4xf32>
    %18 = arith.maximumf %15, %17 : vector<16x4xf32>
    %19 = vector.extract_strided_slice %13 {offsets = [2, 0, 0], sizes = [1, 16, 4], strides = [1, 1, 1]} : vector<4x16x4xf32> to vector<1x16x4xf32>
    %20 = vector.shape_cast %19 : vector<1x16x4xf32> to vector<16x4xf32>
    %21 = vector.extract_strided_slice %13 {offsets = [3, 0, 0], sizes = [1, 16, 4], strides = [1, 1, 1]} : vector<4x16x4xf32> to vector<1x16x4xf32>
    %22 = vector.shape_cast %21 : vector<1x16x4xf32> to vector<16x4xf32>
    %23 = arith.maximumf %20, %22 : vector<16x4xf32>
    %24 = arith.maximumf %18, %23 : vector<16x4xf32>
    %25 = vector.shape_cast %1 : vector<16x16x4xf32> to vector<256x4xf32>
    %c0_3 = arith.constant 0 : index
    %c0_4 = arith.constant 0 : index
    %26 = vector.load %arg3[%c0_3, %c0_4] : memref<4x4xf32, #tpu.memory_space<vmem>>, vector<4x4xf32>
    %cst = arith.constant dense<0.000000e+00> : vector<256x4xf32>
    %27 = tpu.matmul %25, %26, %cst {dimension_numbers = #tpu.dot_dimension_numbers<[1], [0], [0], [1], [0, 0, 1, 1], [], []>} : vector<256x4xf32>, vector<4x4xf32>, vector<256x4xf32> -> vector<256x4xf32>
    %28 = vector.shape_cast %13 : vector<4x16x4xf32> to vector<64x4xf32>
    %c0_5 = arith.constant 0 : index
    %c0_6 = arith.constant 0 : index
    %29 = vector.load %arg4[%c0_5, %c0_6] : memref<4x4xf32, #tpu.memory_space<vmem>>, vector<4x4xf32>
    %cst_7 = arith.constant dense<0.000000e+00> : vector<64x4xf32>
    %30 = tpu.matmul %28, %29, %cst_7 {dimension_numbers = #tpu.dot_dimension_numbers<[1], [0], [0], [1], [0, 0, 1, 1], [], []>} : vector<64x4xf32>, vector<4x4xf32>, vector<64x4xf32> -> vector<64x4xf32>
    %c0_8 = arith.constant 0 : index
    %c0_9 = arith.constant 0 : index
    %31 = vector.load %arg5[%c0_8, %c0_9] : memref<4x4xf32, #tpu.memory_space<vmem>>, vector<4x4xf32>
    %cst_10 = arith.constant dense<0.000000e+00> : vector<16x4xf32>
    %32 = tpu.matmul %24, %31, %cst_10 {dimension_numbers = #tpu.dot_dimension_numbers<[1], [0], [0], [1], [0, 0, 1, 1], [], []>} : vector<16x4xf32>, vector<4x4xf32>, vector<16x4xf32> -> vector<16x4xf32>
    %c0_11 = arith.constant 0 : index
    %c0_12 = arith.constant 0 : index
    %33 = vector.load %arg6[%c0_11, %c0_12] : memref<1x4xf32, #tpu.memory_space<vmem>>, vector<1x4xf32>
    %34 = vector.broadcast %33 : vector<1x4xf32> to vector<16x4xf32>
    %35 = arith.addf %32, %34 : vector<16x4xf32>
    %36 = vector.shape_cast %30 : vector<64x4xf32> to vector<4x16x4xf32>
    %37 = vector.shape_cast %35 : vector<16x4xf32> to vector<1x16x4xf32>
    %38 = vector.broadcast %37 : vector<1x16x4xf32> to vector<4x16x4xf32>
    %39 = arith.addf %36, %38 : vector<4x16x4xf32>
    %40 = vector.shape_cast %27 : vector<256x4xf32> to vector<4x4x16x4xf32>
    %41 = vector.shape_cast %39 : vector<4x16x4xf32> to vector<4x1x16x4xf32>
    %42 = vector.broadcast %41 : vector<4x1x16x4xf32> to vector<4x4x16x4xf32>
    %43 = arith.addf %40, %42 : vector<4x4x16x4xf32>
    %cst_13 = arith.constant 0.000000e+00 : f32
    %44 = vector.broadcast %cst_13 : f32 to vector<4x4x16x4xf32>
    %45 = arith.maximumf %43, %44 : vector<4x4x16x4xf32>
    %46 = vector.shape_cast %45 : vector<4x4x16x4xf32> to vector<16x16x4xf32>
    %c0_14 = arith.constant 0 : index
    %c0_15 = arith.constant 0 : index
    %c0_16 = arith.constant 0 : index
    %c0_17 = arith.constant 0 : index
    %47 = vector.load %arg7[%c0_14, %c0_15, %c0_16, %c0_17] : memref<1x16x16x4xf32, #tpu.memory_space<vmem>>, vector<1x16x16x4xf32>
    %48 = vector.shape_cast %47 : vector<1x16x16x4xf32> to vector<16x16x4xf32>
    %49 = vector.shape_cast %46 : vector<16x16x4xf32> to vector<1x16x16x4xf32>
    tpu.vector_store %arg7[%c0_14, %c0_15, %c0_16, %c0_17], %49 {strides = array<i32>} : memref<1x16x16x4xf32, #tpu.memory_space<vmem>>, vector<1x16x16x4xf32>,
    return
  }
  func.func @transform_0(%arg0: i32, %arg1: i32) -> (i32, i32, i32, i32) {
    %c0_i32 = arith.constant 0 : i32
    %c0_i32_0 = arith.constant 0 : i32
    %c0_i32_1 = arith.constant 0 : i32
    return %arg1, %c0_i32, %arg0, %c0_i32_0 : i32, i32, i32, i32
  }
  func.func @transform_1(%arg0: i32, %arg1: i32) -> (i32, i32) {
    %c0_i32 = arith.constant 0 : i32
    %c0_i32_0 = arith.constant 0 : i32
    %c0_i32_1 = arith.constant 0 : i32
    return %c0_i32, %c0_i32_0 : i32, i32
  }
  func.func @transform_2(%arg0: i32, %arg1: i32) -> (i32, i32) {
    %c0_i32 = arith.constant 0 : i32
    %c0_i32_0 = arith.constant 0 : i32
    %c0_i32_1 = arith.constant 0 : i32
    return %c0_i32, %c0_i32_0 : i32, i32
  }
  func.func @transform_3(%arg0: i32, %arg1: i32) -> (i32, i32) {
    %c0_i32 = arith.constant 0 : i32
    %c0_i32_0 = arith.constant 0 : i32
    %c0_i32_1 = arith.constant 0 : i32
    return %c0_i32, %c0_i32_0 : i32, i32
  }
  func.func @transform_4(%arg0: i32, %arg1: i32) -> (i32, i32) {
    %c0_i32 = arith.constant 0 : i32
    %c0_i32_0 = arith.constant 0 : i32
    %c0_i32_1 = arith.constant 0 : i32
    return %c0_i32, %c0_i32_0 : i32, i32
  }
  func.func @transform_5(%arg0: i32, %arg1: i32) -> (i32, i32, i32, i32) {
    %c0_i32 = arith.constant 0 : i32
    %c0_i32_0 = arith.constant 0 : i32
    %c0_i32_1 = arith.constant 0 : i32
    return %arg1, %c0_i32, %arg0, %c0_i32_0 : i32, i32, i32, i32
  }
}

</mosaic_0001>

<llo_original>
// kernel: tpu_custom_call.1
$region0: #{tpu_custom_call.1}
  #allocation0 [shape = 'u32[]', space=smem, size = 0x4, offset = 0x4, fixed_abs, tag = 'smem constant byte address 0x4 - core index']
  #allocation1 [shape = 'u32[144,128]{1,0:T(1,128)}', space=vmem, size = 0x12000, scoped, tag = 'internal scratch']
  %s0 = inlined_call_operand.vmem [shape: f32[2,16,16,4], index: 0, kind: input, shape index: {}]
  %s1 = inlined_call_operand.vmem [shape: f32[4,4], index: 1, kind: input, shape index: {}]
  %s2 = inlined_call_operand.vmem [shape: f32[4,4], index: 2, kind: input, shape index: {}]
  %s3 = inlined_call_operand.vmem [shape: f32[4,4], index: 3, kind: input, shape index: {}]
  %s4 = inlined_call_operand.vmem [shape: f32[1,4], index: 4, kind: input, shape index: {}]
  %s5 = inlined_call_operand.vmem [shape: f32[2,16,16,4], index: 5, kind: output, shape index: {}]
  %s6 = sld [smem:[#allocation0]]
  $region53: #{tpu_custom_call.1} parent=0
    _
  %s8 = ssub.s32 1, %s6
  %s9 = scalar_select 0, %s8, %s6
  loop: start=0, step=1, limit=4
  $region2: #{tpu_custom_call.1} parent=0 // loop_pre_header
    _
  $region3: #{tpu_custom_call.1} parent=0 // loop_header
    %s11 = sphi 0, %s15
    %p12 = scmp.ge.s32.totalorder %s11, 4
    %s18 = sphi 0, %s30
    %s19 = sphi 0, %s26
    %s20 = sphi 0, %s18
    %s21 = sphi 0, %s19
    %s22 = sphi 0, %s20
    %s23 = sphi 0, %s21
    %s35 = sphi 0, %s37
    %s38 = sphi 0, %s35
    %s39 = sphi 0, %s38
    %s55 = sphi 0, %s39
    %s59 = sphi 0, %s59
    %s61 = sphi 0, %s59
    %s62 = sphi 0, %s61
    %s76 = sphi 0, %s62
    %s80 = sphi 0, %s80
    %s82 = sphi 0, %s80
    %s83 = sphi 0, %s82
    %s97 = sphi 0, %s83
    %s101 = sphi 0, %s101
    %s103 = sphi 0, %s101
    %s104 = sphi 0, %s103
    %s118 = sphi 0, %s104
    %s122 = sphi 0, %s122
    %s124 = sphi 0, %s122
    %s125 = sphi 0, %s124
    %s139 = sphi 0, %s125
    %s147 = sphi 0, %s149
    %s150 = sphi 0, %s147
    %s151 = sphi 0, %s150
    %s167 = sphi 0, %s151
  $region4: #{tpu_custom_call.1} parent=0 // loop_header_branch
    %14 = sbr.rel (%p12) target = $region8
  $region5: #{tpu_custom_call.1} parent=0 // loop_body
    %s16 = ssub.s32 %s11, 1
    %s17 = ssub.s32 %s11, 2
    %s24 = sadd.s32 1, %s19
    %p25 = scmp.ge.s32.totalorder %s24, 2
    %s26 = scalar_select %p25, 0, %s24
    %s27 = sadd.s32 1, %s18
    %s28 = scalar_select %p25, %s27, %s18
    %p29 = scmp.ge.s32.totalorder %s28, 1
    %s30 = scalar_select %p29, 0, %s28
    %s31 = ssub.s32 %s19, %s26
    %s32 = ssub.s32 %s18, %s30
    %s33 = sor.u32 %s31, %s32
    %p34 = scmp.eq.s32.totalorder %s33, 0
    %s36 = sadd.s32 %s35, 1
    %s37 = scalar_select %p34, %s35, %s36
    %p40 = pneg %p34
    %p41 = scmp.eq.s32.totalorder %s11, 1
    %p42 = por %p40, %p41
    %p43 = scmp.ne.s32.totalorder %s35, %s38
    %p44 = scmp.eq.s32.totalorder %s11, 0
    %p45 = por %p43, %p44
    %p46 = scmp.ne.s32.totalorder %s35, %s38
    %p47 = scmp.eq.s32.totalorder %s16, 1
    %p48 = por %p46, %p47
    %p49 = scmp.ne.s32.totalorder %s38, %s39
    %p50 = scmp.eq.s32.totalorder %s16, 0
    %p51 = por %p49, %p50
    %p52 = scmp.ne.s32.totalorder %s38, %s39
    %p53 = scmp.eq.s32.totalorder %s17, 1
    %p54 = por %p52, %p53
    %p56 = scmp.ne.s32.totalorder %s39, %s55
    %p57 = scmp.eq.s32.totalorder %s17, 0
    %p58 = por %p56, %p57
    %s60 = sadd.s32 %s59, 1
    %p63 = scmp.eq.s32.totalorder %s11, 1
    %p64 = scmp.ne.s32.totalorder %s59, %s61
    %p65 = scmp.eq.s32.totalorder %s11, 0
    %p66 = por %p64, %p65
    %p67 = scmp.ne.s32.totalorder %s59, %s61
    %p68 = scmp.eq.s32.totalorder %s16, 1
    %p69 = por %p67, %p68
    %p70 = scmp.ne.s32.totalorder %s61, %s62
    %p71 = scmp.eq.s32.totalorder %s16, 0
    %p72 = por %p70, %p71
    %p73 = scmp.ne.s32.totalorder %s61, %s62
    %p74 = scmp.eq.s32.totalorder %s17, 1
    %p75 = por %p73, %p74
    %p77 = scmp.ne.s32.totalorder %s62, %s76
    %p78 = scmp.eq.s32.totalorder %s17, 0
    %p79 = por %p77, %p78
    %s81 = sadd.s32 %s80, 1
    %p84 = scmp.eq.s32.totalorder %s11, 1
    %p85 = scmp.ne.s32.totalorder %s80, %s82
    %p86 = scmp.eq.s32.totalorder %s11, 0
    %p87 = por %p85, %p86
    %p88 = scmp.ne.s32.totalorder %s80, %s82
    %p89 = scmp.eq.s32.totalorder %s16, 1
    %p90 = por %p88, %p89
    %p91 = scmp.ne.s32.totalorder %s82, %s83
    %p92 = scmp.eq.s32.totalorder %s16, 0
    %p93 = por %p91, %p92
    %p94 = scmp.ne.s32.totalorder %s82, %s83
    %p95 = scmp.eq.s32.totalorder %s17, 1
    %p96 = por %p94, %p95
    %p98 = scmp.ne.s32.totalorder %s83, %s97
    %p99 = scmp.eq.s32.totalorder %s17, 0
    %p100 = por %p98, %p99
    %s102 = sadd.s32 %s101, 1
    %p105 = scmp.eq.s32.totalorder %s11, 1
    %p106 = scmp.ne.s32.totalorder %s101, %s103
    %p107 = scmp.eq.s32.totalorder %s11, 0
    %p108 = por %p106, %p107
    %p109 = scmp.ne.s32.totalorder %s101, %s103
    %p110 = scmp.eq.s32.totalorder %s16, 1
    %p111 = por %p109, %p110
    %p112 = scmp.ne.s32.totalorder %s103, %s104
    %p113 = scmp.eq.s32.totalorder %s16, 0
    %p114 = por %p112, %p113
    %p115 = scmp.ne.s32.totalorder %s103, %s104
    %p116 = scmp.eq.s32.totalorder %s17, 1
    %p117 = por %p115, %p116
    %p119 = scmp.ne.s32.totalorder %s104, %s118
    %p120 = scmp.eq.s32.totalorder %s17, 0
    %p121 = por %p119, %p120
    %s123 = sadd.s32 %s122, 1
    %p126 = scmp.eq.s32.totalorder %s11, 1
    %p127 = scmp.ne.s32.totalorder %s122, %s124
    %p128 = scmp.eq.s32.totalorder %s11, 0
    %p129 = por %p127, %p128
    %p130 = scmp.ne.s32.totalorder %s122, %s124
    %p131 = scmp.eq.s32.totalorder %s16, 1
    %p132 = por %p130, %p131
    %p133 = scmp.ne.s32.totalorder %s124, %s125
    %p134 = scmp.eq.s32.totalorder %s16, 0
    %p135 = por %p133, %p134
    %p136 = scmp.ne.s32.totalorder %s124, %s125
    %p137 = scmp.eq.s32.totalorder %s17, 1
    %p138 = por %p136, %p137
    %p140 = scmp.ne.s32.totalorder %s125, %s139
    %p141 = scmp.eq.s32.totalorder %s17, 0
    %p142 = por %p140, %p141
    %s143 = ssub.s32 %s19, %s26
    %s144 = ssub.s32 %s18, %s30
    %s145 = sor.u32 %s143, %s144
    %p146 = scmp.eq.s32.totalorder %s145, 0
    %s148 = sadd.s32 %s147, 1
    %s149 = scalar_select %p146, %s147, %s148
    %p152 = pneg %p146
    %p153 = scmp.eq.s32.totalorder %s11, 1
    %p154 = por %p152, %p153
    %p155 = scmp.ne.s32.totalorder %s147, %s150
    %p156 = scmp.eq.s32.totalorder %s11, 0
    %p157 = por %p155, %p156
    %p158 = scmp.ne.s32.totalorder %s147, %s150
    %p159 = scmp.eq.s32.totalorder %s16, 1
    %p160 = por %p158, %p159
    %p161 = scmp.ne.s32.totalorder %s150, %s151
    %p162 = scmp.eq.s32.totalorder %s16, 0
    %p163 = por %p161, %p162
    %p164 = scmp.ne.s32.totalorder %s150, %s151
    %p165 = scmp.eq.s32.totalorder %s17, 1
    %p166 = por %p164, %p165
    %p168 = scmp.ne.s32.totalorder %s151, %s167
    %p169 = scmp.eq.s32.totalorder %s17, 0
    %p170 = por %p168, %p169
    %p171 = scmp.le.s32.totalorder 1, %s11
    %p172 = scmp.lt.s32.totalorder %s11, 3
    %p173 = pnand %p171, %p172
    %p174 = pneg %p173
    // Predicated region
    $region9: #{tpu_custom_call.1} parent=5 // pred_check
      _
    $region10: #{tpu_custom_call.1} parent=5 // pred_check_branch
      %176 = sbr.rel (%p173) target = $region12
    $region11: #{tpu_custom_call.1} parent=5 // pred_region
      %s177 = ssub.s32 %s11, 1
      // Predicated region
      $region13: #{tpu_custom_call.1} parent=11 // pred_check
        %p178 = pneg %p72
      $region14: #{tpu_custom_call.1} parent=11 // pred_check_branch
        %180 = sbr.rel (%p178) target = $region16
      $region15: #{tpu_custom_call.1} parent=11 // pred_region
        _
      $region16: #{tpu_custom_call.1} parent=11 // pred_fallthru
        _
      // Predicated region
      $region17: #{tpu_custom_call.1} parent=11 // pred_check
        %p181 = pneg %p93
      $region18: #{tpu_custom_call.1} parent=11 // pred_check_branch
        %183 = sbr.rel (%p181) target = $region20
      $region19: #{tpu_custom_call.1} parent=11 // pred_region
        _
      $region20: #{tpu_custom_call.1} parent=11 // pred_fallthru
        _
      // Predicated region
      $region21: #{tpu_custom_call.1} parent=11 // pred_check
        %p184 = pneg %p114
      $region22: #{tpu_custom_call.1} parent=11 // pred_check_branch
        %186 = sbr.rel (%p184) target = $region24
      $region23: #{tpu_custom_call.1} parent=11 // pred_region
        _
      $region24: #{tpu_custom_call.1} parent=11 // pred_fallthru
        _
      // Predicated region
      $region25: #{tpu_custom_call.1} parent=11 // pred_check
        %p187 = pneg %p135
      $region26: #{tpu_custom_call.1} parent=11 // pred_check_branch
        %189 = sbr.rel (%p187) target = $region28
      $region27: #{tpu_custom_call.1} parent=11 // pred_region
        _
      $region28: #{tpu_custom_call.1} parent=11 // pred_fallthru
        _
    $region12: #{tpu_custom_call.1} parent=5 // pred_fallthru
      _
    %p190 = scmp.lt.s32.totalorder %s11, 2
    // Predicated region
    $region29: #{tpu_custom_call.1} parent=5 // pred_check
      %p191 = pneg %p190
    $region30: #{tpu_custom_call.1} parent=5 // pred_check_branch
      %193 = sbr.rel (%p191) target = $region32
    $region31: #{tpu_custom_call.1} parent=5 // pred_region
      // Predicated region
      $region33: #{tpu_custom_call.1} parent=31 // pred_check
        %p194 = pneg %p45
      $region34: #{tpu_custom_call.1} parent=31 // pred_check_branch
        %196 = sbr.rel (%p194) target = $region36
      $region35: #{tpu_custom_call.1} parent=31 // pred_region
        %s197 = smul.u32 2, %s18
        %p198 = scmp.lt.s32.totalorder %s19, 1
        %s199 = scalar_select %p198, %s19, 1
        %p200 = scmp.lt.s32.totalorder %s197, 1
        %s201 = scalar_select %p200, %s197, 1
        %s202 = smul.addr %s199, 32
        %s203 = sadd.s32 %s201, %s202
        %s204 = smul.addr %s203, 8
        %s205 = scalar_lea.vmem %s0, %s204
        %s206 = smul.u32 2, %s18
      $region36: #{tpu_custom_call.1} parent=31 // pred_fallthru
        _
    $region32: #{tpu_custom_call.1} parent=5 // pred_fallthru
      _
    %p207 = scmp.le.s32.totalorder 1, %s11
    %p208 = scmp.lt.s32.totalorder %s11, 3
    %p209 = pnand %p207, %p208
    %p210 = pneg %p209
    // Predicated region
    $region37: #{tpu_custom_call.1} parent=5 // pred_check
      _
    $region38: #{tpu_custom_call.1} parent=5 // pred_check_branch
      %212 = sbr.rel (%p209) target = $region40
    $region39: #{tpu_custom_call.1} parent=5 // pred_region
      %s213 = ssub.s32 %s11, 1
      %s214 = smul.u32 2, %s20
      %p215 = scmp.lt.s32.totalorder %s21, 1
      %s216 = scalar_select %p215, %s21, 1
      %p217 = scmp.lt.s32.totalorder %s214, 1
      %s218 = scalar_select %p217, %s214, 1
      %s219 = smul.addr %s216, 32
      %s220 = sadd.s32 %s218, %s219
      %s221 = smul.addr %s220, 8
      %s222 = scalar_lea.vmem %s0, %s221
      %p223 = pneg %p51
      %p224 = pneg %p48
      %p225 = pneg %p72
      %p226 = pneg %p69
      %p227 = pneg %p93
      %p228 = pneg %p90
      %p229 = pneg %p114
      %p230 = pneg %p111
      %p231 = pneg %p135
      %p232 = pneg %p132
      %p233 = pneg %p163
      %p234 = pneg %p160
      %s235 = smul.u32 2, %s20
      %p236 = scmp.lt.s32.totalorder %s21, 1
      %s237 = scalar_select %p236, %s21, 1
      %p238 = scmp.lt.s32.totalorder %s235, 1
      %s239 = scalar_select %p238, %s235, 1
      %s240 = smul.addr %s237, 32
      %s241 = sadd.s32 %s239, %s240
      %s242 = smul.addr %s241, 8
      %s243 = scalar_lea.vmem %s5, %s242
      %s244 = smul.u32 2, %s20
      %p245 = scmp.lt.s32.totalorder %s21, 1
      %s246 = scalar_select %p245, %s21, 1
      %p247 = scmp.lt.s32.totalorder %s244, 1
      %s248 = scalar_select %p247, %s244, 1
      %s249 = smul.addr %s246, 32
      %s250 = sadd.s32 %s248, %s249
      %s251 = smul.addr %s250, 8
      %s252 = scalar_lea.vmem %s0, %s251
      %s253 = smul.u32 2, %s20
      %s254 = smul.u32 2, %s20
      %p255 = scmp.lt.s32.totalorder %s21, 1
      %s256 = scalar_select %p255, %s21, 1
      %p257 = scmp.lt.s32.totalorder %s254, 1
      %s258 = scalar_select %p257, %s254, 1
      %s259 = smul.addr %s256, 32
      %s260 = sadd.s32 %s258, %s259
      %s261 = smul.addr %s260, 8
      %s262 = scalar_lea.vmem %s5, %s261
      %s263 = smul.u32 2, %s20
      %v264 = vld [vmem:[%s252] sm:$0xff]
      %v265 = vld [vmem:[%s252 + $0x8] sm:$0xff]
      %v266 = vld [vmem:[%s252 + $0x10] sm:$0xff]
      %v267 = vld [vmem:[%s252 + $0x18] sm:$0xff]
      %v268 = vld [vmem:[%s252 + $0x20] sm:$0xff]
      %v269 = vld [vmem:[%s252 + $0x28] sm:$0xff]
      %v270 = vld [vmem:[%s252 + $0x30] sm:$0xff]
      %v271 = vld [vmem:[%s252 + $0x38] sm:$0xff]
      %v272 = vld [vmem:[%s252 + $0x40] sm:$0xff]
      %v273 = vld [vmem:[%s252 + $0x48] sm:$0xff]
      %v274 = vld [vmem:[%s252 + $0x50] sm:$0xff]
      %v275 = vld [vmem:[%s252 + $0x58] sm:$0xff]
      %v276 = vld [vmem:[%s252 + $0x60] sm:$0xff]
      %v277 = vld [vmem:[%s252 + $0x68] sm:$0xff]
      %v278 = vld [vmem:[%s252 + $0x70] sm:$0xff]
      %v279 = vld [vmem:[%s252 + $0x78] sm:$0xff]
      %v280 = vld [vmem:[%s252 + $0x80] sm:$0xff]
      %v281 = vld [vmem:[%s252 + $0x88] sm:$0xff]
      %v282 = vld [vmem:[%s252 + $0x90] sm:$0xff]
      %v283 = vld [vmem:[%s252 + $0x98] sm:$0xff]
      %v284 = vld [vmem:[%s252 + $0xa0] sm:$0xff]
      %v285 = vld [vmem:[%s252 + $0xa8] sm:$0xff]
      %v286 = vld [vmem:[%s252 + $0xb0] sm:$0xff]
      %v287 = vld [vmem:[%s252 + $0xb8] sm:$0xff]
      %v288 = vld [vmem:[%s252 + $0xc0] sm:$0xff]
      %v289 = vld [vmem:[%s252 + $0xc8] sm:$0xff]
      %v290 = vld [vmem:[%s252 + $0xd0] sm:$0xff]
      %v291 = vld [vmem:[%s252 + $0xd8] sm:$0xff]
      %v292 = vld [vmem:[%s252 + $0xe0] sm:$0xff]
      %v293 = vld [vmem:[%s252 + $0xe8] sm:$0xff]
      %v294 = vld [vmem:[%s252 + $0xf0] sm:$0xff]
      %v295 = vld [vmem:[%s252 + $0xf8] sm:$0xff]
      %v296 = vmax.f32 %v264, %v266
      %v297 = vmax.f32 %v265, %v267
      %v298 = vmax.f32 %v272, %v274
      %v299 = vmax.f32 %v273, %v275
      %v300 = vmax.f32 %v280, %v282
      %v301 = vmax.f32 %v281, %v283
      %v302 = vmax.f32 %v288, %v290
      %v303 = vmax.f32 %v289, %v291
      %v304 = vmax.f32 %v268, %v270
      %v305 = vmax.f32 %v269, %v271
      %v306 = vmax.f32 %v276, %v278
      %v307 = vmax.f32 %v277, %v279
      %v308 = vmax.f32 %v284, %v286
      %v309 = vmax.f32 %v285, %v287
      %v310 = vmax.f32 %v292, %v294
      %v311 = vmax.f32 %v293, %v295
      %v312 = vmax.f32 %v296, %v304
      %v313 = vmax.f32 %v297, %v305
      %v314 = vmax.f32 %v298, %v306
      %v315 = vmax.f32 %v299, %v307
      %v316 = vmax.f32 %v300, %v308
      %v317 = vmax.f32 %v301, %v309
      %v318 = vmax.f32 %v302, %v310
      %v319 = vmax.f32 %v303, %v311
      %v320 = vmax.f32 %v312, %v314
      %v321 = vmax.f32 %v313, %v315
      %v322 = vmax.f32 %v316, %v318
      %v323 = vmax.f32 %v317, %v319
      %v324 = vmax.f32 %v320, %v322
      %v325 = vmax.f32 %v321, %v323
      %v326 = vld [vmem:[%s1] sm:$0xf]
      %vm327 = vcmask 31744
      %v329 = vsel %vm327, %v264, 0
      %v332 = vsel %vm327, %v265, 0
      %v335 = vsel %vm327, %v266, 0
      %v338 = vsel %vm327, %v267, 0
      %v341 = vsel %vm327, %v268, 0
      %v344 = vsel %vm327, %v269, 0
      %v347 = vsel %vm327, %v270, 0
      %v350 = vsel %vm327, %v271, 0
      %v353 = vsel %vm327, %v272, 0
      %v356 = vsel %vm327, %v273, 0
      %v359 = vsel %vm327, %v274, 0
      %v362 = vsel %vm327, %v275, 0
      %v365 = vsel %vm327, %v276, 0
      %v368 = vsel %vm327, %v277, 0
      %v371 = vsel %vm327, %v278, 0
      %v374 = vsel %vm327, %v279, 0
      %v377 = vsel %vm327, %v280, 0
      %v380 = vsel %vm327, %v281, 0
      %v383 = vsel %vm327, %v282, 0
      %v386 = vsel %vm327, %v283, 0
      %v389 = vsel %vm327, %v284, 0
      %v392 = vsel %vm327, %v285, 0
      %v395 = vsel %vm327, %v286, 0
      %v398 = vsel %vm327, %v287, 0
      %v401 = vsel %vm327, %v288, 0
      %v404 = vsel %vm327, %v289, 0
      %v407 = vsel %vm327, %v290, 0
      %v410 = vsel %vm327, %v291, 0
      %v413 = vsel %vm327, %v292, 0
      %v416 = vsel %vm327, %v293, 0
      %v419 = vsel %vm327, %v294, 0
      %v422 = vsel %vm327, %v295, 0
      %vm424 = vcmask 1043456
      %v426 = vsel %vm424, %v326, 0
      %428 = vmatprep.subr.mxu0 0.0
      %429 = vmatpush1.msra.mxu0 %v426
      %430 = vmatprep.subr.mxu0 0.0
      %431 = vmatpush1.msra.mxu0 0.0
      %432 = vmatprep.subr.mxu0 0.0
      %433 = vmatpush1.msra.mxu0 0.0
      %434 = vmatprep.subr.mxu0 0.0
      %435 = vmatpush1.msra.mxu0 0.0
      %436 = vmatprep.subr.mxu0 0.0
      %437 = vmatpush1.msra.mxu0 0.0
      %438 = vmatprep.subr.mxu0 0.0
      %439 = vmatpush1.msra.mxu0 0.0
      %440 = vmatprep.subr.mxu0 0.0
      %441 = vmatpush1.msra.mxu0 0.0
      %442 = vmatprep.subr.mxu0 0.0
      %443 = vmatpush1.msra.mxu0 0.0
      %444 = vmatprep.subr.mxu0 0.0
      %445 = vmatpush1.msra.mxu0 0.0
      %446 = vmatprep.subr.mxu0 0.0
      %447 = vmatpush1.msra.mxu0 0.0
      %448 = vmatprep.subr.mxu0 0.0
      %449 = vmatpush1.msra.mxu0 0.0
      %450 = vmatprep.subr.mxu0 0.0
      %451 = vmatpush1.msra.mxu0 0.0
      %452 = vmatprep.subr.mxu0 0.0
      %453 = vmatpush1.msra.mxu0 0.0
      %454 = vmatprep.subr.mxu0 0.0
      %455 = vmatpush1.msra.mxu0 0.0
      %456 = vmatprep.subr.mxu0 0.0
      %457 = vmatpush1.msra.mxu0 0.0
      %458 = vmatprep.subr.mxu0 0.0
      %459 = vmatpush1.msra.mxu0 0.0
      %460 = vmatprep.subr.mxu0 0.0
      %461 = vmatpush1.msra.mxu0 0.0
      %462 = vmatprep.subr.mxu0 0.0
      %463 = vmatpush1.msra.mxu0 0.0
      %464 = vmatprep.subr.mxu0 0.0
      %465 = vmatpush1.msra.mxu0 0.0
      %466 = vmatprep.subr.mxu0 0.0
      %467 = vmatpush1.msra.mxu0 0.0
      %468 = vmatprep.subr.mxu0 0.0
      %469 = vmatpush1.msra.mxu0 0.0
      %470 = vmatprep.subr.mxu0 0.0
      %471 = vmatpush1.msra.mxu0 0.0
      %472 = vmatprep.subr.mxu0 0.0
      %473 = vmatpush1.msra.mxu0 0.0
      %474 = vmatprep.subr.mxu0 0.0
      %475 = vmatpush1.msra.mxu0 0.0
      %476 = vmatprep.subr.mxu0 0.0
      %477 = vmatpush1.msra.mxu0 0.0
      %478 = vmatprep.subr.mxu0 0.0
      %479 = vmatpush1.msra.mxu0 0.0
      %480 = vmatprep.subr.mxu0 0.0
      %481 = vmatpush1.msra.mxu0 0.0
      %482 = vmatprep.subr.mxu0 0.0
      %483 = vmatpush1.msra.mxu0 0.0
      %484 = vmatprep.subr.mxu0 0.0
      %485 = vmatpush1.msra.mxu0 0.0
      %486 = vmatprep.subr.mxu0 0.0
      %487 = vmatpush1.msra.mxu0 0.0
      %488 = vmatprep.subr.mxu0 0.0
      %489 = vmatpush1.msra.mxu0 0.0
      %490 = vmatprep.subr.mxu0 0.0
      %491 = vmatpush1.msra.mxu0 0.0
      %492 = vmatprep.mubr.f32.mxu0 0.0
      %493 = vmatmul.mubr.f32.gmra.mrb[0].mxu0 %v329
      %v494 = vpop.f32.mrb[0].mxu0
      %v495 = vadd.f32 0.0, %v494
      %v496 = vpop.f32.mrb[0].mxu0
      %497 = vmatprep.mubr.f32.mxu0 0.0
      %498 = vmatmul.mubr.f32.gmra.mrb[0].mxu0 %v332
      %v499 = vpop.f32.mrb[0].mxu0
      %v500 = vadd.f32 0.0, %v499
      %v501 = vpop.f32.mrb[0].mxu0
      %502 = vmatprep.mubr.f32.mxu0 0.0
      %503 = vmatmul.mubr.f32.gmra.mrb[0].mxu0 %v335
      %v504 = vpop.f32.mrb[0].mxu0
      %v505 = vadd.f32 0.0, %v504
      %v506 = vpop.f32.mrb[0].mxu0
      %507 = vmatprep.mubr.f32.mxu0 0.0
      %508 = vmatmul.mubr.f32.gmra.mrb[0].mxu0 %v338
      %v509 = vpop.f32.mrb[0].mxu0
      %v510 = vadd.f32 0.0, %v509
      %v511 = vpop.f32.mrb[0].mxu0
      %512 = vmatprep.mubr.f32.mxu0 0.0
      %513 = vmatmul.mubr.f32.gmra.mrb[0].mxu0 %v341
      %v514 = vpop.f32.mrb[0].mxu0
      %v515 = vadd.f32 0.0, %v514
      %v516 = vpop.f32.mrb[0].mxu0
      %517 = vmatprep.mubr.f32.mxu0 0.0
      %518 = vmatmul.mubr.f32.gmra.mrb[0].mxu0 %v344
      %v519 = vpop.f32.mrb[0].mxu0
      %v520 = vadd.f32 0.0, %v519
      %v521 = vpop.f32.mrb[0].mxu0
      %522 = vmatprep.mubr.f32.mxu0 0.0
      %523 = vmatmul.mubr.f32.gmra.mrb[0].mxu0 %v347
      %v524 = vpop.f32.mrb[0].mxu0
      %v525 = vadd.f32 0.0, %v524
      %v526 = vpop.f32.mrb[0].mxu0
      %527 = vmatprep.mubr.f32.mxu0 0.0
      %528 = vmatmul.mubr.f32.gmra.mrb[0].mxu0 %v350
      %v529 = vpop.f32.mrb[0].mxu0
      %v530 = vadd.f32 0.0, %v529
      %v531 = vpop.f32.mrb[0].mxu0
      %532 = vmatprep.mubr.f32.mxu0 0.0
      %533 = vmatmul.mubr.f32.gmra.mrb[0].mxu0 %v353
      %v534 = vpop.f32.mrb[0].mxu0
      %v535 = vadd.f32 0.0, %v534
      %v536 = vpop.f32.mrb[0].mxu0
      %537 = vmatprep.mubr.f32.mxu0 0.0
      %538 = vmatmul.mubr.f32.gmra.mrb[0].mxu0 %v356
      %v539 = vpop.f32.mrb[0].mxu0
      %v540 = vadd.f32 0.0, %v539
      %v541 = vpop.f32.mrb[0].mxu0
      %542 = vmatprep.mubr.f32.mxu0 0.0
      %543 = vmatmul.mubr.f32.gmra.mrb[0].mxu0 %v359
      %v544 = vpop.f32.mrb[0].mxu0
      %v545 = vadd.f32 0.0, %v544
      %v546 = vpop.f32.mrb[0].mxu0
      %547 = vmatprep.mubr.f32.mxu0 0.0
      %548 = vmatmul.mubr.f32.gmra.mrb[0].mxu0 %v362
      %v549 = vpop.f32.mrb[0].mxu0
      %v550 = vadd.f32 0.0, %v549
      %v551 = vpop.f32.mrb[0].mxu0
      %552 = vmatprep.mubr.f32.mxu0 0.0
      %553 = vmatmul.mubr.f32.gmra.mrb[0].mxu0 %v365
      %v554 = vpop.f32.mrb[0].mxu0
      %v555 = vadd.f32 0.0, %v554
      %v556 = vpop.f32.mrb[0].mxu0
      %557 = vmatprep.mubr.f32.mxu0 0.0
      %558 = vmatmul.mubr.f32.gmra.mrb[0].mxu0 %v368
      %v559 = vpop.f32.mrb[0].mxu0
      %v560 = vadd.f32 0.0, %v559
      %v561 = vpop.f32.mrb[0].mxu0
      %562 = vmatprep.mubr.f32.mxu0 0.0
      %563 = vmatmul.mubr.f32.gmra.mrb[0].mxu0 %v371
      %v564 = vpop.f32.mrb[0].mxu0
      %v565 = vadd.f32 0.0, %v564
      %v566 = vpop.f32.mrb[0].mxu0
      %567 = vmatprep.mubr.f32.mxu0 0.0
      %568 = vmatmul.mubr.f32.gmra.mrb[0].mxu0 %v374
      %v569 = vpop.f32.mrb[0].mxu0
      %v570 = vadd.f32 0.0, %v569
      %v571 = vpop.f32.mrb[0].mxu0
      %572 = vmatprep.mubr.f32.mxu0 0.0
      %573 = vmatmul.mubr.f32.gmra.mrb[0].mxu0 %v377
      %v574 = vpop.f32.mrb[0].mxu0
      %v575 = vadd.f32 0.0, %v574
      %v576 = vpop.f32.mrb[0].mxu0
      %577 = vmatprep.mubr.f32.mxu0 0.0
      %578 = vmatmul.mubr.f32.gmra.mrb[0].mxu0 %v380
      %v579 = vpop.f32.mrb[0].mxu0
      %v580 = vadd.f32 0.0, %v579
      %v581 = vpop.f32.mrb[0].mxu0
      %582 = vmatprep.mubr.f32.mxu0 0.0
      %583 = vmatmul.mubr.f32.gmra.mrb[0].mxu0 %v383
      %v584 = vpop.f32.mrb[0].mxu0
      %v585 = vadd.f32 0.0, %v584
      %v586 = vpop.f32.mrb[0].mxu0
      %587 = vmatprep.mubr.f32.mxu0 0.0
      %588 = vmatmul.mubr.f32.gmra.mrb[0].mxu0 %v386
      %v589 = vpop.f32.mrb[0].mxu0
      %v590 = vadd.f32 0.0, %v589
      %v591 = vpop.f32.mrb[0].mxu0
      %592 = vmatprep.mubr.f32.mxu0 0.0
      %593 = vmatmul.mubr.f32.gmra.mrb[0].mxu0 %v389
      %v594 = vpop.f32.mrb[0].mxu0
      %v595 = vadd.f32 0.0, %v594
      %v596 = vpop.f32.mrb[0].mxu0
      %597 = vmatprep.mubr.f32.mxu0 0.0
      %598 = vmatmul.mubr.f32.gmra.mrb[0].mxu0 %v392
      %v599 = vpop.f32.mrb[0].mxu0
      %v600 = vadd.f32 0.0, %v599
      %v601 = vpop.f32.mrb[0].mxu0
      %602 = vmatprep.mubr.f32.mxu0 0.0
      %603 = vmatmul.mubr.f32.gmra.mrb[0].mxu0 %v395
      %v604 = vpop.f32.mrb[0].mxu0
      %v605 = vadd.f32 0.0, %v604
      %v606 = vpop.f32.mrb[0].mxu0
      %607 = vmatprep.mubr.f32.mxu0 0.0
      %608 = vmatmul.mubr.f32.gmra.mrb[0].mxu0 %v398
      %v609 = vpop.f32.mrb[0].mxu0
      %v610 = vadd.f32 0.0, %v609
      %v611 = vpop.f32.mrb[0].mxu0
      %612 = vmatprep.mubr.f32.mxu0 0.0
      %613 = vmatmul.mubr.f32.gmra.mrb[0].mxu0 %v401
      %v614 = vpop.f32.mrb[0].mxu0
      %v615 = vadd.f32 0.0, %v614
      %v616 = vpop.f32.mrb[0].mxu0
      %617 = vmatprep.mubr.f32.mxu0 0.0
      %618 = vmatmul.mubr.f32.gmra.mrb[0].mxu0 %v404
      %v619 = vpop.f32.mrb[0].mxu0
      %v620 = vadd.f32 0.0, %v619
      %v621 = vpop.f32.mrb[0].mxu0
      %622 = vmatprep.mubr.f32.mxu0 0.0
      %623 = vmatmul.mubr.f32.gmra.mrb[0].mxu0 %v407
      %v624 = vpop.f32.mrb[0].mxu0
      %v625 = vadd.f32 0.0, %v624
      %v626 = vpop.f32.mrb[0].mxu0
      %627 = vmatprep.mubr.f32.mxu0 0.0
      %628 = vmatmul.mubr.f32.gmra.mrb[0].mxu0 %v410
      %v629 = vpop.f32.mrb[0].mxu0
      %v630 = vadd.f32 0.0, %v629
      %v631 = vpop.f32.mrb[0].mxu0
      %632 = vmatprep.mubr.f32.mxu0 0.0
      %633 = vmatmul.mubr.f32.gmra.mrb[0].mxu0 %v413
      %v634 = vpop.f32.mrb[0].mxu0
      %v635 = vadd.f32 0.0, %v634
      %v636 = vpop.f32.mrb[0].mxu0
      %637 = vmatprep.mubr.f32.mxu0 0.0
      %638 = vmatmul.mubr.f32.gmra.mrb[0].mxu0 %v416
      %v639 = vpop.f32.mrb[0].mxu0
      %v640 = vadd.f32 0.0, %v639
      %v641 = vpop.f32.mrb[0].mxu0
      %642 = vmatprep.mubr.f32.mxu0 0.0
      %643 = vmatmul.mubr.f32.gmra.mrb[0].mxu0 %v419
      %v644 = vpop.f32.mrb[0].mxu0
      %v645 = vadd.f32 0.0, %v644
      %v646 = vpop.f32.mrb[0].mxu0
      %647 = vmatprep.mubr.f32.mxu0 0.0
      %648 = vmatmul.mubr.f32.gmra.mrb[0].mxu0 %v422
      %v649 = vpop.f32.mrb[0].mxu0
      %v650 = vadd.f32 0.0, %v649
      %v651 = vpop.f32.mrb[0].mxu0
      %652 = vdwg.mxu0
      %v653 = vld [vmem:[%s2] sm:$0xf]
      %v655 = vsel %vm327, %v312, 0
      %v658 = vsel %vm327, %v313, 0
      %v661 = vsel %vm327, %v314, 0
      %v664 = vsel %vm327, %v315, 0
      %v667 = vsel %vm327, %v316, 0
      %v670 = vsel %vm327, %v317, 0
      %v673 = vsel %vm327, %v318, 0
      %v676 = vsel %vm327, %v319, 0
      %v679 = vsel %vm424, %v653, 0
      %681 = vmatprep.subr.mxu0 0.0
      %682 = vmatpush1.msra.mxu0 %v679
      %683 = vmatprep.subr.mxu0 0.0
      %684 = vmatpush1.msra.mxu0 0.0
      %685 = vmatprep.subr.mxu0 0.0
      %686 = vmatpush1.msra.mxu0 0.0
      %687 = vmatprep.subr.mxu0 0.0
      %688 = vmatpush1.msra.mxu0 0.0
      %689 = vmatprep.subr.mxu0 0.0
      %690 = vmatpush1.msra.mxu0 0.0
      %691 = vmatprep.subr.mxu0 0.0
      %692 = vmatpush1.msra.mxu0 0.0
      %693 = vmatprep.subr.mxu0 0.0
      %694 = vmatpush1.msra.mxu0 0.0
      %695 = vmatprep.subr.mxu0 0.0
      %696 = vmatpush1.msra.mxu0 0.0
      %697 = vmatprep.subr.mxu0 0.0
      %698 = vmatpush1.msra.mxu0 0.0
      %699 = vmatprep.subr.mxu0 0.0
      %700 = vmatpush1.msra.mxu0 0.0
      %701 = vmatprep.subr.mxu0 0.0
      %702 = vmatpush1.msra.mxu0 0.0
      %703 = vmatprep.subr.mxu0 0.0
      %704 = vmatpush1.msra.mxu0 0.0
      %705 = vmatprep.subr.mxu0 0.0
      %706 = vmatpush1.msra.mxu0 0.0
      %707 = vmatprep.subr.mxu0 0.0
      %708 = vmatpush1.msra.mxu0 0.0
      %709 = vmatprep.subr.mxu0 0.0
      %710 = vmatpush1.msra.mxu0 0.0
      %711 = vmatprep.subr.mxu0 0.0
      %712 = vmatpush1.msra.mxu0 0.0
      %713 = vmatprep.subr.mxu0 0.0
      %714 = vmatpush1.msra.mxu0 0.0
      %715 = vmatprep.subr.mxu0 0.0
      %716 = vmatpush1.msra.mxu0 0.0
      %717 = vmatprep.subr.mxu0 0.0
      %718 = vmatpush1.msra.mxu0 0.0
      %719 = vmatprep.subr.mxu0 0.0
      %720 = vmatpush1.msra.mxu0 0.0
      %721 = vmatprep.subr.mxu0 0.0
      %722 = vmatpush1.msra.mxu0 0.0
      %723 = vmatprep.subr.mxu0 0.0
      %724 = vmatpush1.msra.mxu0 0.0
      %725 = vmatprep.subr.mxu0 0.0
      %726 = vmatpush1.msra.mxu0 0.0
      %727 = vmatprep.subr.mxu0 0.0
      %728 = vmatpush1.msra.mxu0 0.0
      %729 = vmatprep.subr.mxu0 0.0
      %730 = vmatpush1.msra.mxu0 0.0
      %731 = vmatprep.subr.mxu0 0.0
      %732 = vmatpush1.msra.mxu0 0.0
      %733 = vmatprep.subr.mxu0 0.0
      %734 = vmatpush1.msra.mxu0 0.0
      %735 = vmatprep.subr.mxu0 0.0
      %736 = vmatpush1.msra.mxu0 0.0
      %737 = vmatprep.subr.mxu0 0.0
      %738 = vmatpush1.msra.mxu0 0.0
      %739 = vmatprep.subr.mxu0 0.0
      %740 = vmatpush1.msra.mxu0 0.0
      %741 = vmatprep.subr.mxu0 0.0
      %742 = vmatpush1.msra.mxu0 0.0
      %743 = vmatprep.subr.mxu0 0.0
      %744 = vmatpush1.msra.mxu0 0.0
      %745 = vmatprep.mubr.f32.mxu0 0.0
      %746 = vmatmul.mubr.f32.gmra.mrb[0].mxu0 %v655
      %v747 = vpop.f32.mrb[0].mxu0
      %v748 = vadd.f32 0.0, %v747
      %v749 = vpop.f32.mrb[0].mxu0
      %750 = vmatprep.mubr.f32.mxu0 0.0
      %751 = vmatmul.mubr.f32.gmra.mrb[0].mxu0 %v658
      %v752 = vpop.f32.mrb[0].mxu0
      %v753 = vadd.f32 0.0, %v752
      %v754 = vpop.f32.mrb[0].mxu0
      %755 = vmatprep.mubr.f32.mxu0 0.0
      %756 = vmatmul.mubr.f32.gmra.mrb[0].mxu0 %v661
      %v757 = vpop.f32.mrb[0].mxu0
      %v758 = vadd.f32 0.0, %v757
      %v759 = vpop.f32.mrb[0].mxu0
      %760 = vmatprep.mubr.f32.mxu0 0.0
      %761 = vmatmul.mubr.f32.gmra.mrb[0].mxu0 %v664
      %v762 = vpop.f32.mrb[0].mxu0
      %v763 = vadd.f32 0.0, %v762
      %v764 = vpop.f32.mrb[0].mxu0
      %765 = vmatprep.mubr.f32.mxu0 0.0
      %766 = vmatmul.mubr.f32.gmra.mrb[0].mxu0 %v667
      %v767 = vpop.f32.mrb[0].mxu0
      %v768 = vadd.f32 0.0, %v767
      %v769 = vpop.f32.mrb[0].mxu0
      %770 = vmatprep.mubr.f32.mxu0 0.0
      %771 = vmatmul.mubr.f32.gmra.mrb[0].mxu0 %v670
      %v772 = vpop.f32.mrb[0].mxu0
      %v773 = vadd.f32 0.0, %v772
      %v774 = vpop.f32.mrb[0].mxu0
      %775 = vmatprep.mubr.f32.mxu0 0.0
      %776 = vmatmul.mubr.f32.gmra.mrb[0].mxu0 %v673
      %v777 = vpop.f32.mrb[0].mxu0
      %v778 = vadd.f32 0.0, %v777
      %v779 = vpop.f32.mrb[0].mxu0
      %780 = vmatprep.mubr.f32.mxu0 0.0
      %781 = vmatmul.mubr.f32.gmra.mrb[0].mxu0 %v676
      %v782 = vpop.f32.mrb[0].mxu0
      %v783 = vadd.f32 0.0, %v782
      %v784 = vpop.f32.mrb[0].mxu0
      %785 = vdwg.mxu0
      %v786 = vld [vmem:[%s3] sm:$0xf]
      %v787 = vld [vmem:[%s4] sm:$0x1]
      %v789 = vlaneseq
      %v790 = vshrl.u32 %v789, 7
      %v791 = vsub.s32 0, %v790
      %v792 = vrot.slane %v787, %v791
      %v795 = vsel %vm327, %v324, 0
      %v798 = vsel %vm327, %v325, 0
      %v801 = vsel %vm424, %v786, 0
      %803 = vmatprep.subr.mxu0 0.0
      %804 = vmatpush1.msra.mxu0 %v801
      %805 = vmatprep.subr.mxu0 0.0
      %806 = vmatpush1.msra.mxu0 0.0
      %807 = vmatprep.subr.mxu0 0.0
      %808 = vmatpush1.msra.mxu0 0.0
      %809 = vmatprep.subr.mxu0 0.0
      %810 = vmatpush1.msra.mxu0 0.0
      %811 = vmatprep.subr.mxu0 0.0
      %812 = vmatpush1.msra.mxu0 0.0
      %813 = vmatprep.subr.mxu0 0.0
      %814 = vmatpush1.msra.mxu0 0.0
      %815 = vmatprep.subr.mxu0 0.0
      %816 = vmatpush1.msra.mxu0 0.0
      %817 = vmatprep.subr.mxu0 0.0
      %818 = vmatpush1.msra.mxu0 0.0
      %819 = vmatprep.subr.mxu0 0.0
      %820 = vmatpush1.msra.mxu0 0.0
      %821 = vmatprep.subr.mxu0 0.0
      %822 = vmatpush1.msra.mxu0 0.0
      %823 = vmatprep.subr.mxu0 0.0
      %824 = vmatpush1.msra.mxu0 0.0
      %825 = vmatprep.subr.mxu0 0.0
      %826 = vmatpush1.msra.mxu0 0.0
      %827 = vmatprep.subr.mxu0 0.0
      %828 = vmatpush1.msra.mxu0 0.0
      %829 = vmatprep.subr.mxu0 0.0
      %830 = vmatpush1.msra.mxu0 0.0
      %831 = vmatprep.subr.mxu0 0.0
      %832 = vmatpush1.msra.mxu0 0.0
      %833 = vmatprep.subr.mxu0 0.0
      %834 = vmatpush1.msra.mxu0 0.0
      %835 = vmatprep.subr.mxu0 0.0
      %836 = vmatpush1.msra.mxu0 0.0
      %837 = vmatprep.subr.mxu0 0.0
      %838 = vmatpush1.msra.mxu0 0.0
      %839 = vmatprep.subr.mxu0 0.0
      %840 = vmatpush1.msra.mxu0 0.0
      %841 = vmatprep.subr.mxu0 0.0
      %842 = vmatpush1.msra.mxu0 0.0
      %843 = vmatprep.subr.mxu0 0.0
      %844 = vmatpush1.msra.mxu0 0.0
      %845 = vmatprep.subr.mxu0 0.0
      %846 = vmatpush1.msra.mxu0 0.0
      %847 = vmatprep.subr.mxu0 0.0
      %848 = vmatpush1.msra.mxu0 0.0
      %849 = vmatprep.subr.mxu0 0.0
      %850 = vmatpush1.msra.mxu0 0.0
      %851 = vmatprep.subr.mxu0 0.0
      %852 = vmatpush1.msra.mxu0 0.0
      %853 = vmatprep.subr.mxu0 0.0
      %854 = vmatpush1.msra.mxu0 0.0
      %855 = vmatprep.subr.mxu0 0.0
      %856 = vmatpush1.msra.mxu0 0.0
      %857 = vmatprep.subr.mxu0 0.0
      %858 = vmatpush1.msra.mxu0 0.0
      %859 = vmatprep.subr.mxu0 0.0
      %860 = vmatpush1.msra.mxu0 0.0
      %861 = vmatprep.subr.mxu0 0.0
      %862 = vmatpush1.msra.mxu0 0.0
      %863 = vmatprep.subr.mxu0 0.0
      %864 = vmatpush1.msra.mxu0 0.0
      %865 = vmatprep.subr.mxu0 0.0
      %866 = vmatpush1.msra.mxu0 0.0
      %867 = vmatprep.mubr.f32.mxu0 0.0
      %868 = vmatmul.mubr.f32.gmra.mrb[0].mxu0 %v795
      %v869 = vpop.f32.mrb[0].mxu0
      %v870 = vadd.f32 %v792, %v869
      %v871 = vpop.f32.mrb[0].mxu0
      %872 = vmatprep.mubr.f32.mxu0 0.0
      %873 = vmatmul.mubr.f32.gmra.mrb[0].mxu0 %v798
      %v874 = vpop.f32.mrb[0].mxu0
      %v875 = vadd.f32 %v792, %v874
      %v876 = vpop.f32.mrb[0].mxu0
      %877 = vdwg.mxu0
      %v878 = vadd.f32 %v748, %v870
      %v879 = vadd.f32 %v753, %v875
      %v880 = vadd.f32 %v758, %v870
      %v881 = vadd.f32 %v763, %v875
      %v882 = vadd.f32 %v768, %v870
      %v883 = vadd.f32 %v773, %v875
      %v884 = vadd.f32 %v778, %v870
      %v885 = vadd.f32 %v783, %v875
      %v886 = vadd.f32 %v495, %v878
      %v887 = vadd.f32 %v500, %v879
      %v888 = vadd.f32 %v505, %v878
      %v889 = vadd.f32 %v510, %v879
      %v890 = vadd.f32 %v515, %v878
      %v891 = vadd.f32 %v520, %v879
      %v892 = vadd.f32 %v525, %v878
      %v893 = vadd.f32 %v530, %v879
      %v894 = vadd.f32 %v535, %v880
      %v895 = vadd.f32 %v540, %v881
      %v896 = vadd.f32 %v545, %v880
      %v897 = vadd.f32 %v550, %v881
      %v898 = vadd.f32 %v555, %v880
      %v899 = vadd.f32 %v560, %v881
      %v900 = vadd.f32 %v565, %v880
      %v901 = vadd.f32 %v570, %v881
      %v902 = vadd.f32 %v575, %v882
      %v903 = vadd.f32 %v580, %v883
      %v904 = vadd.f32 %v585, %v882
      %v905 = vadd.f32 %v590, %v883
      %v906 = vadd.f32 %v595, %v882
      %v907 = vadd.f32 %v600, %v883
      %v908 = vadd.f32 %v605, %v882
      %v909 = vadd.f32 %v610, %v883
      %v910 = vadd.f32 %v615, %v884
      %v911 = vadd.f32 %v620, %v885
      %v912 = vadd.f32 %v625, %v884
      %v913 = vadd.f32 %v630, %v885
      %v914 = vadd.f32 %v635, %v884
      %v915 = vadd.f32 %v640, %v885
      %v916 = vadd.f32 %v645, %v884
      %v917 = vadd.f32 %v650, %v885
      %v918 = vmax.f32 %v886, 0.0
      %v919 = vmax.f32 %v887, 0.0
      %v920 = vmax.f32 %v888, 0.0
      %v921 = vmax.f32 %v889, 0.0
      %v922 = vmax.f32 %v890, 0.0
      %v923 = vmax.f32 %v891, 0.0
      %v924 = vmax.f32 %v892, 0.0
      %v925 = vmax.f32 %v893, 0.0
      %v926 = vmax.f32 %v894, 0.0
      %v927 = vmax.f32 %v895, 0.0
      %v928 = vmax.f32 %v896, 0.0
      %v929 = vmax.f32 %v897, 0.0
      %v930 = vmax.f32 %v898, 0.0
      %v931 = vmax.f32 %v899, 0.0
      %v932 = vmax.f32 %v900, 0.0
      %v933 = vmax.f32 %v901, 0.0
      %v934 = vmax.f32 %v902, 0.0
      %v935 = vmax.f32 %v903, 0.0
      %v936 = vmax.f32 %v904, 0.0
      %v937 = vmax.f32 %v905, 0.0
      %v938 = vmax.f32 %v906, 0.0
      %v939 = vmax.f32 %v907, 0.0
      %v940 = vmax.f32 %v908, 0.0
      %v941 = vmax.f32 %v909, 0.0
      %v942 = vmax.f32 %v910, 0.0
      %v943 = vmax.f32 %v911, 0.0
      %v944 = vmax.f32 %v912, 0.0
      %v945 = vmax.f32 %v913, 0.0
      %v946 = vmax.f32 %v914, 0.0
      %v947 = vmax.f32 %v915, 0.0
      %v948 = vmax.f32 %v916, 0.0
      %v949 = vmax.f32 %v917, 0.0
      %950 = vst.msk [vmem:[%s262] sm:$0xff] %vm327, %v918
      %951 = vst.msk [vmem:[%s262 + $0x8] sm:$0xff] %vm327, %v919
      %952 = vst.msk [vmem:[%s262 + $0x10] sm:$0xff] %vm327, %v920
      %953 = vst.msk [vmem:[%s262 + $0x18] sm:$0xff] %vm327, %v921
      %954 = vst.msk [vmem:[%s262 + $0x20] sm:$0xff] %vm327, %v922
      %955 = vst.msk [vmem:[%s262 + $0x28] sm:$0xff] %vm327, %v923
      %956 = vst.msk [vmem:[%s262 + $0x30] sm:$0xff] %vm327, %v924
      %957 = vst.msk [vmem:[%s262 + $0x38] sm:$0xff] %vm327, %v925
      %958 = vst.msk [vmem:[%s262 + $0x40] sm:$0xff] %vm327, %v926
      %959 = vst.msk [vmem:[%s262 + $0x48] sm:$0xff] %vm327, %v927
      %960 = vst.msk [vmem:[%s262 + $0x50] sm:$0xff] %vm327, %v928
      %961 = vst.msk [vmem:[%s262 + $0x58] sm:$0xff] %vm327, %v929
      %962 = vst.msk [vmem:[%s262 + $0x60] sm:$0xff] %vm327, %v930
      %963 = vst.msk [vmem:[%s262 + $0x68] sm:$0xff] %vm327, %v931
      %964 = vst.msk [vmem:[%s262 + $0x70] sm:$0xff] %vm327, %v932
      %965 = vst.msk [vmem:[%s262 + $0x78] sm:$0xff] %vm327, %v933
      %966 = vst.msk [vmem:[%s262 + $0x80] sm:$0xff] %vm327, %v934
      %967 = vst.msk [vmem:[%s262 + $0x88] sm:$0xff] %vm327, %v935
      %968 = vst.msk [vmem:[%s262 + $0x90] sm:$0xff] %vm327, %v936
      %969 = vst.msk [vmem:[%s262 + $0x98] sm:$0xff] %vm327, %v937
      %970 = vst.msk [vmem:[%s262 + $0xa0] sm:$0xff] %vm327, %v938
      %971 = vst.msk [vmem:[%s262 + $0xa8] sm:$0xff] %vm327, %v939
      %972 = vst.msk [vmem:[%s262 + $0xb0] sm:$0xff] %vm327, %v940
      %973 = vst.msk [vmem:[%s262 + $0xb8] sm:$0xff] %vm327, %v941
      %974 = vst.msk [vmem:[%s262 + $0xc0] sm:$0xff] %vm327, %v942
      %975 = vst.msk [vmem:[%s262 + $0xc8] sm:$0xff] %vm327, %v943
      %976 = vst.msk [vmem:[%s262 + $0xd0] sm:$0xff] %vm327, %v944
      %977 = vst.msk [vmem:[%s262 + $0xd8] sm:$0xff] %vm327, %v945
      %978 = vst.msk [vmem:[%s262 + $0xe0] sm:$0xff] %vm327, %v946
      %979 = vst.msk [vmem:[%s262 + $0xe8] sm:$0xff] %vm327, %v947
      %980 = vst.msk [vmem:[%s262 + $0xf0] sm:$0xff] %vm327, %v948
      %981 = vst.msk [vmem:[%s262 + $0xf8] sm:$0xff] %vm327, %v949
      %s982 = smul.u32 2, %s20
      %p983 = scmp.lt.s32.totalorder %s21, 1
      %s984 = scalar_select %p983, %s21, 1
      %p985 = scmp.lt.s32.totalorder %s982, 1
      %s986 = scalar_select %p985, %s982, 1
      %s987 = smul.addr %s984, 32
      %s988 = sadd.s32 %s986, %s987
      %s989 = smul.addr %s988, 8
      %s990 = scalar_lea.vmem %s5, %s989
      // Predicated region
      $region41: #{tpu_custom_call.1} parent=39 // pred_check
        %p991 = pneg %p160
      $region42: #{tpu_custom_call.1} parent=39 // pred_check_branch
        %993 = sbr.rel (%p991) target = $region44
      $region43: #{tpu_custom_call.1} parent=39 // pred_region
        %s994 = smul.u32 2, %s20
      $region44: #{tpu_custom_call.1} parent=39 // pred_fallthru
        _
    $region40: #{tpu_custom_call.1} parent=5 // pred_fallthru
      _
    %p995 = scmp.le.s32.totalorder 2, %s11
    // Predicated region
    $region45: #{tpu_custom_call.1} parent=5 // pred_check
      %p996 = pneg %p995
    $region46: #{tpu_custom_call.1} parent=5 // pred_check_branch
      %998 = sbr.rel (%p996) target = $region48
    $region47: #{tpu_custom_call.1} parent=5 // pred_region
      %s999 = ssub.s32 %s11, 2
      // Predicated region
      $region49: #{tpu_custom_call.1} parent=47 // pred_check
        %p1000 = pneg %p166
      $region50: #{tpu_custom_call.1} parent=47 // pred_check_branch
        %1002 = sbr.rel (%p1000) target = $region52
      $region51: #{tpu_custom_call.1} parent=47 // pred_region
        %s1003 = smul.u32 2, %s22
        %p1004 = scmp.lt.s32.totalorder %s23, 1
        %s1005 = scalar_select %p1004, %s23, 1
        %p1006 = scmp.lt.s32.totalorder %s1003, 1
        %s1007 = scalar_select %p1006, %s1003, 1
        %s1008 = smul.addr %s1005, 32
        %s1009 = sadd.s32 %s1007, %s1008
        %s1010 = smul.addr %s1009, 8
        %s1011 = scalar_lea.vmem %s5, %s1010
      $region52: #{tpu_custom_call.1} parent=47 // pred_fallthru
        _
    $region48: #{tpu_custom_call.1} parent=5 // pred_fallthru
      _
  $region6: #{tpu_custom_call.1} parent=0 // loop_footer
    %s15 = sadd.s32 1, %s11
  $region7: #{tpu_custom_call.1} parent=0 // loop_footer_branch
    %10 = sbr.rel target = $region3
  $region8: #{tpu_custom_call.1} parent=0 // loop_exit
    _

</llo_original>
